<compile_context>
chip_gen: v7x
topology: tpu7x:2x2x1
jax: 0.10.0
libtpu: 0.0.40
codegen_flags: <defaults>
</compile_context>

<pallas_src>
import numpy as np
import jax
import jax.numpy as jnp
from jax.experimental import pallas as pl
from jax.experimental.pallas import tpu as pltpu


def _round_up(x, m):
    return (x + m - 1) // m * m


def _choose_output_tile(P_pad):
    # lane-dense output tiles; prefer >= 2 grid steps so megacore can split P
    for t in (512, 384, 256, 128):
        if P_pad % t == 0 and P_pad // t >= 2:
            return t
    for t in (512, 384, 256, 128):
        if P_pad % t == 0:
            return t
    return P_pad


def _choose_k_tile(K_pad):
    # small images: keep >= 2 K blocks so the band machinery is exercised
    if K_pad <= 512:
        return 128
    for t in (512, 256, 128):
        if K_pad % t == 0:
            return t
    return K_pad


# ----------------------------------------------------------------------------
# Pallas kernel: banded one-hot select (exact gather on the MXU) + per-row
# normalization, accumulated directly in the resident output block.
# ----------------------------------------------------------------------------
def _compose_kernel(kstart_ref, idx_ref, x_ref, mean_ref, inv_ref, o_ref):
    # kstart_ref: (n_p_tiles,) int32 SMEM  first K-block index per output tile
    # idx_ref   : (1, tp)  int32  global source pixel index (-1 => zero fill)
    # x_ref     : (M, tk)  f32    fused image+mask rows, K block kstart[p]+k
    # mean_ref  : (M, 1)   f32    per-row mean   (0 for mask / padding rows)
    # inv_ref   : (M, 1)   f32    per-row 1/std  (1 for mask / padding rows)
    # o_ref     : (M, tp)  f32    output tile, resident across the K axis
    p = pl.program_id(0)
    k = pl.program_id(1)
    tk = x_ref.shape[1]
    tp = idx_ref.shape[1]

    @pl.when(k == 0)
    def _():
        o_ref[...] = jnp.zeros_like(o_ref)

    # One-hot selection block for source band [koff, koff + tk).  The iota is
    # loop-invariant; only the (1, tp) index row is shifted per grid step.
    koff = (kstart_ref[p] + k) * tk
    col = jax.lax.broadcasted_iota(jnp.int32, (tk, tp), 0)
    onehot = (col == (idx_ref[...] - koff)).astype(jnp.float32)
    # Exact select: each output column hits at most one 1 across ALL k steps,
    # every other contribution is an exact 0.0.
    o_ref[...] += jnp.dot(x_ref[...], onehot, preferred_element_type=jnp.float32)

    @pl.when(k == pl.num_programs(1) - 1)
    def _():
        o_ref[...] = (o_ref[...] - mean_ref[...]) * inv_ref[...]


def _apply_compose(x, idx, kstart, mean, inv, *, tp, tk, n_kb):
    M, _ = x.shape
    P_pad = idx.shape[1]
    n_p = P_pad // tp
    grid = (n_p, n_kb)
    # per-step VMEM: double-buffered I/O blocks + onehot/iota intermediates
    vmem_est = 4 * (2 * (M * tk + tp + M * tp + 2 * M) + 3 * tk * tp)
    vmem_limit = int(min(max(32 << 20, 2 * vmem_est), 48 << 20))  # v7x-safe cap
    return pl.pallas_call(
        _compose_kernel,
        out_shape=jax.ShapeDtypeStruct((M, P_pad), jnp.float32),
        grid_spec=pltpu.PrefetchScalarGridSpec(
            num_scalar_prefetch=1,
            grid=grid,
            in_specs=[
                pl.BlockSpec((1, tp), lambda p, k, ks: (0, p)),          # indices
                pl.BlockSpec((M, tk), lambda p, k, ks: (0, ks[p] + k)),  # banded rows
                pl.BlockSpec((M, 1), lambda p, k, ks: (0, 0)),           # mean
                pl.BlockSpec((M, 1), lambda p, k, ks: (0, 0)),           # 1/std
            ],
            out_specs=pl.BlockSpec((M, tp), lambda p, k, ks: (0, p)),
        ),
        compiler_params=pltpu.CompilerParams(
            dimension_semantics=("parallel", "arbitrary"),
            vmem_limit_bytes=vmem_limit),
        cost_estimate=pl.CostEstimate(
            flops=2 * M * (n_kb * tk) * P_pad,
            transcendentals=0,
            bytes_accessed=4 * (n_p * n_kb * M * tk + P_pad + 4 * M + M * P_pad)),
    )(kstart, idx, x, mean, inv)


# ----------------------------------------------------------------------------
# Host-side glue: flat source-index vector for
#   pad -> (vflip?) -> (hflip?) -> (rotate?, nearest, fill=0)
# ----------------------------------------------------------------------------
def build_gather_indices(H, W, pad, do_vflip, do_hflip, do_rotate, angle_deg):
    Hp, Wp = H + 2 * pad, W + 2 * pad
    ii, jj = np.meshgrid(np.arange(Hp), np.arange(Wp), indexing="ij")
    yy = ii.astype(np.float64)
    xx = jj.astype(np.float64)
    valid = np.ones((Hp, Wp), dtype=bool)

    # invert the transform chain, last op first
    if do_rotate:
        # torchvision-style rotate: nearest interp, center rotation, fill=0.
        # TODO(synk): np.round is half-to-even; torchvision nearest may differ
        # by one pixel at exact .5 source coordinates.
        theta = np.deg2rad(angle_deg)
        cy, cx = (Hp - 1) / 2.0, (Wp - 1) / 2.0
        dy, dx = yy - cy, xx - cx
        c, s = np.cos(theta), np.sin(theta)
        sx = c * dx - s * dy + cx
        sy = s * dx + c * dy + cy
        xx = np.round(sx)
        yy = np.round(sy)
        valid &= (xx >= 0) & (xx < Wp) & (yy >= 0) & (yy < Hp)
        xx = np.clip(xx, 0, Wp - 1)
        yy = np.clip(yy, 0, Hp - 1)

    if do_hflip:
        xx = (Wp - 1) - xx
    if do_vflip:
        yy = (Hp - 1) - yy

    # inverse of zero padding
    src_y = yy - pad
    src_x = xx - pad
    valid &= (src_y >= 0) & (src_y < H) & (src_x >= 0) & (src_x < W)
    src_y = np.clip(src_y, 0, H - 1).astype(np.int64)
    src_x = np.clip(src_x, 0, W - 1).astype(np.int64)

    idx = np.where(valid.reshape(-1), (src_y * W + src_x).reshape(-1), -1)
    return idx.astype(np.int32), Hp, Wp


def build_k_band(idx_pad_flat, tp, tk, K_pad):
    """Per output-tile first K-block index + static max band width (blocks)."""
    P_pad = idx_pad_flat.shape[0]
    n_p = P_pad // tp
    n_k_blocks = K_pad // tk
    kmin_blk = np.zeros(n_p, np.int64)
    span = np.ones(n_p, np.int64)
    for t in range(n_p):
        seg = idx_pad_flat[t * tp:(t + 1) * tp]
        v = seg[seg >= 0]
        if v.size:
            lo = int(v.min()) // tk
            hi = int(v.max()) // tk
            kmin_blk[t] = lo
            span[t] = hi - lo + 1
    n_kb = int(span.max())
    # clamp so the window [kstart, kstart + n_kb) stays in range; shifting the
    # window left still covers each tile's true band.
    kstart = np.minimum(kmin_blk, n_k_blocks - n_kb).astype(np.int32)
    return kstart, n_kb


# ----------------------------------------------------------------------------
# Module wrapper (mirrors SemSegCompose.forward)
# ----------------------------------------------------------------------------
def semseg_compose(img, mask_img, padding, mean_ch, std_ch, max_angle, rng):
    N, C, H, W = img.shape
    Nm, Cm, Hm, Wm = mask_img.shape
    assert (Hm, Wm) == (H, W)

    # host-side random decisions (np.random in the PyTorch module)
    do_vflip = rng.random() > 0.5
    do_hflip = rng.random() > 0.5
    do_rotate = rng.random() > 0.5
    angle = int(rng.integers(-max_angle, max_angle)) if do_rotate else 0

    idx_np, Hp, Wp = build_gather_indices(
        H, W, padding, do_vflip, do_hflip, do_rotate, angle)

    K, P = H * W, Hp * Wp
    M_img, M_msk = N * C, Nm * Cm
    M = M_img + M_msk

    K_pad = _round_up(K, 128)
    P_pad = _round_up(P, 128)
    M_pad = _round_up(M, 8)
    tp = _choose_output_tile(P_pad)
    tk = _choose_k_tile(K_pad)

    # fuse image + mask rows into one kernel call (mask rows: mean 0, inv 1);
    # everything stays f32 (no bf16 round trip).
    x = jnp.zeros((M_pad, K_pad), jnp.float32)
    x = x.at[:M_img, :K].set(img.reshape(M_img, K).astype(jnp.float32))
    x = x.at[M_img:M, :K].set(mask_img.reshape(M_msk, K).astype(jnp.float32))

    mean_np = np.zeros((M_pad, 1), np.float32)
    inv_np = np.ones((M_pad, 1), np.float32)
    mean_np[:M_img, 0] = np.tile(np.asarray(mean_ch, np.float32), N)
    inv_np[:M_img, 0] = np.tile(1.0 / np.asarray(std_ch, np.float32), N)

    idx_pad = np.full((P_pad,), -1, np.int32)
    idx_pad[:P] = idx_np
    kstart_np, n_kb = build_k_band(idx_pad, tp, tk, K_pad)

    out = _apply_compose(
        x, jnp.asarray(idx_pad.reshape(1, P_pad)), jnp.asarray(kstart_np),
        jnp.asarray(mean_np), jnp.asarray(inv_np), tp=tp, tk=tk, n_kb=n_kb)

    img_out = out[:M_img, :P].reshape(N, C, Hp, Wp)
    # Mask labels survive exactly: each output pixel selects at most one input
    # pixel (one-hot column) in f32; round() only strips float noise.
    mask_out = jnp.round(out[M_img:M, :P]).astype(mask_img.dtype)
    mask_out = mask_out.reshape(Nm, Cm, Hp, Wp)
    return img_out, mask_out, (idx_np, mean_np, inv_np, Hp, Wp)


if __name__ == "__main__":
    key = jax.random.PRNGKey(0)
    k1, k2 = jax.random.split(key)

    N, C, H, W = 2, 3, 16, 16
    padding = 2
    mean_ch = (0.485, 0.456, 0.406)
    std_ch = (0.229, 0.224, 0.225)
    max_angle = 30

    img = jax.random.uniform(k1, (N, C, H, W), jnp.float32)
    mask = jax.random.randint(k2, (N, 1, H, W), 0, 5).astype(jnp.int32)

    # deterministic host RNG for the augmentation coin flips
    rng = np.random.default_rng(0)

    img_out, mask_out, (idx_np, mean_np, inv_np, Hp, Wp) = semseg_compose(
        img, mask, padding, mean_ch, std_ch, max_angle, rng)
    jax.block_until_ready((img_out, mask_out))

    # -------- reference check (plain f32 JAX gather mirroring the kernel) ---
    K = H * W
    M_img, M_msk = N * C, N * 1
    valid = idx_np >= 0
    safe = np.where(valid, idx_np, 0)
    valid_j = jnp.asarray(valid)

    img_flat = img.reshape(M_img, K).astype(jnp.float32)
    ref_img = jnp.where(valid_j[None, :], img_flat[:, safe], 0.0)
    ref_img = (ref_img - jnp.asarray(mean_np[:M_img])) * jnp.asarray(inv_np[:M_img])
    ref_img = ref_img.reshape(N, C, Hp, Wp)

    mask_flat = mask.reshape(M_msk, K).astype(jnp.float32)
    ref_mask = jnp.where(valid_j[None, :], mask_flat[:, safe], 0.0)
    ref_mask = jnp.round(ref_mask).astype(jnp.int32).reshape(N, 1, Hp, Wp)

    assert img_out.shape == (N, C, H + 2 * padding, W + 2 * padding)
    assert mask_out.shape == (N, 1, H + 2 * padding, W + 2 * padding)
    assert jnp.allclose(img_out, ref_img, rtol=2e-5, atol=2e-5), "image mismatch"
    assert jnp.array_equal(mask_out, ref_mask), "mask mismatch"

    print("KERNEL_OK")
</pallas_src>

<mosaic_0001>
module attributes {stable_mosaic.version = 11 : i64} {
  func.func @_compose_kernel(%arg0: i32, %arg1: i32, %arg2: memref<2xi32, #tpu.memory_space<smem>>, %arg3: memref<1x256xi32, #tpu.memory_space<vmem>>, %arg4: memref<8x128xf32, #tpu.memory_space<vmem>>, %arg5: memref<8x1xf32, #tpu.memory_space<vmem>>, %arg6: memref<8x1xf32, #tpu.memory_space<vmem>>, %arg7: memref<8x256xf32, #tpu.memory_space<vmem>>) attributes {dimension_semantics = [#tpu.dimension_semantics<parallel>, #tpu.dimension_semantics<arbitrary>], iteration_bounds = array<i64: 2, 2>, scalar_prefetch = 1 : i64, scratch_operands = 0 : i64, tpu.core_type = #tpu.core_type<tc>, window_params = [{transform_indices = @transform_0, window_bounds = array<i64: 1, 256>}, {transform_indices = @transform_1, window_bounds = array<i64: 8, 128>}, {pipeline_mode = #tpu.pipeline_mode<synchronous>, transform_indices = @transform_2, window_bounds = array<i64: 8, 1>}, {pipeline_mode = #tpu.pipeline_mode<synchronous>, transform_indices = @transform_3, window_bounds = array<i64: 8, 1>}, {transform_indices = @transform_4, window_bounds = array<i64: 8, 256>}]} {
    %c0_i32 = arith.constant 0 : i32
    %0 = arith.cmpi eq, %arg1, %c0_i32 : i32
    %1 = arith.extui %0 : i1 to i32
    %c0_i32_0 = arith.constant 0 : i32
    %2 = arith.cmpi ne, %1, %c0_i32_0 : i32
    scf.if %2 {
      %cst_9 = arith.constant 0.000000e+00 : f32
      %23 = vector.broadcast %cst_9 : f32 to vector<8x256xf32>
      %c0_10 = arith.constant 0 : index
      %c0_11 = arith.constant 0 : index
      %24 = vector.load %arg7[%c0_10, %c0_11] : memref<8x256xf32, #tpu.memory_space<vmem>>, vector<8x256xf32>
      tpu.vector_store %arg7[%c0_10, %c0_11], %23 {strides = array<i32>} : memref<8x256xf32, #tpu.memory_space<vmem>>, vector<8x256xf32>,
    } else {
    }
    %3 = arith.index_cast %arg0 : i32 to index
    %4 = memref.load %arg2[%3] : memref<2xi32, #tpu.memory_space<smem>>
    %5 = arith.addi %4, %arg1 : i32
    %c128_i32 = arith.constant 128 : i32
    %6 = arith.muli %5, %c128_i32 : i32
    %7 = tpu.iota {dimensions = array<i32: 0>} : vector<128x256xi32>
    %c0 = arith.constant 0 : index
    %c0_1 = arith.constant 0 : index
    %8 = vector.load %arg3[%c0, %c0_1] : memref<1x256xi32, #tpu.memory_space<vmem>>, vector<1x256xi32>
    %9 = vector.broadcast %6 : i32 to vector<1x256xi32>
    %10 = arith.subi %8, %9 : vector<1x256xi32>
    %11 = vector.broadcast %10 : vector<1x256xi32> to vector<128x256xi32>
    %12 = arith.cmpi eq, %7, %11 : vector<128x256xi32>
    %13 = arith.extui %12 : vector<128x256xi1> to vector<128x256xi32>
    %14 = arith.sitofp %13 : vector<128x256xi32> to vector<128x256xf32>
    %c0_2 = arith.constant 0 : index
    %c0_3 = arith.constant 0 : index
    %15 = vector.load %arg7[%c0_2, %c0_3] : memref<8x256xf32, #tpu.memory_space<vmem>>, vector<8x256xf32>
    %c0_4 = arith.constant 0 : index
    %c0_5 = arith.constant 0 : index
    %16 = vector.load %arg4[%c0_4, %c0_5] : memref<8x128xf32, #tpu.memory_space<vmem>>, vector<8x128xf32>
    %cst = arith.constant dense<0.000000e+00> : vector<8x256xf32>
    %17 = tpu.matmul %16, %14, %cst {dimension_numbers = #tpu.dot_dimension_numbers<[1], [0], [0], [1], [0, 0, 1, 1], [], []>} : vector<8x128xf32>, vector<128x256xf32>, vector<8x256xf32> -> vector<8x256xf32>
    %18 = arith.addf %15, %17 : vector<8x256xf32>
    %c0_6 = arith.constant 0 : index
    %c0_7 = arith.constant 0 : index
    %19 = vector.load %arg7[%c0_6, %c0_7] : memref<8x256xf32, #tpu.memory_space<vmem>>, vector<8x256xf32>
    tpu.vector_store %arg7[%c0_6, %c0_7], %18 {strides = array<i32>} : memref<8x256xf32, #tpu.memory_space<vmem>>, vector<8x256xf32>,
    %c1_i32 = arith.constant 1 : i32
    %20 = arith.cmpi eq, %arg1, %c1_i32 : i32
    %21 = arith.extui %20 : i1 to i32
    %c0_i32_8 = arith.constant 0 : i32
    %22 = arith.cmpi ne, %21, %c0_i32_8 : i32
    scf.if %22 {
      %c0_9 = arith.constant 0 : index
      %c0_10 = arith.constant 0 : index
      %23 = vector.load %arg7[%c0_9, %c0_10] : memref<8x256xf32, #tpu.memory_space<vmem>>, vector<8x256xf32>
      %c0_11 = arith.constant 0 : index
      %c0_12 = arith.constant 0 : index
      %24 = vector.load %arg5[%c0_11, %c0_12] : memref<8x1xf32, #tpu.memory_space<vmem>>, vector<8x1xf32>
      %25 = vector.broadcast %24 : vector<8x1xf32> to vector<8x256xf32>
      %26 = arith.subf %23, %25 : vector<8x256xf32>
      %c0_13 = arith.constant 0 : index
      %c0_14 = arith.constant 0 : index
      %27 = vector.load %arg6[%c0_13, %c0_14] : memref<8x1xf32, #tpu.memory_space<vmem>>, vector<8x1xf32>
      %28 = vector.broadcast %27 : vector<8x1xf32> to vector<8x256xf32>
      %29 = arith.mulf %26, %28 : vector<8x256xf32>
      %c0_15 = arith.constant 0 : index
      %c0_16 = arith.constant 0 : index
      %30 = vector.load %arg7[%c0_15, %c0_16] : memref<8x256xf32, #tpu.memory_space<vmem>>, vector<8x256xf32>
      tpu.vector_store %arg7[%c0_15, %c0_16], %29 {strides = array<i32>} : memref<8x256xf32, #tpu.memory_space<vmem>>, vector<8x256xf32>,
    } else {
    }
    return
  }
  func.func @transform_0(%arg0: i32, %arg1: i32, %arg2: memref<2xi32, #tpu.memory_space<smem>>) -> (i32, i32) {
    %c0_i32 = arith.constant 0 : i32
    %c0_i32_0 = arith.constant 0 : i32
    return %c0_i32, %arg0 : i32, i32
  }
  func.func @transform_1(%arg0: i32, %arg1: i32, %arg2: memref<2xi32, #tpu.memory_space<smem>>) -> (i32, i32) {
    %0 = arith.index_cast %arg0 : i32 to index
    %1 = memref.load %arg2[%0] : memref<2xi32, #tpu.memory_space<smem>>
    %2 = arith.addi %1, %arg1 : i32
    %c0_i32 = arith.constant 0 : i32
    %c0_i32_0 = arith.constant 0 : i32
    return %c0_i32, %2 : i32, i32
  }
  func.func @transform_2(%arg0: i32, %arg1: i32, %arg2: memref<2xi32, #tpu.memory_space<smem>>) -> (i32, i32) {
    %c0_i32 = arith.constant 0 : i32
    %c0_i32_0 = arith.constant 0 : i32
    %c0_i32_1 = arith.constant 0 : i32
    return %c0_i32, %c0_i32_0 : i32, i32
  }
  func.func @transform_3(%arg0: i32, %arg1: i32, %arg2: memref<2xi32, #tpu.memory_space<smem>>) -> (i32, i32) {
    %c0_i32 = arith.constant 0 : i32
    %c0_i32_0 = arith.constant 0 : i32
    %c0_i32_1 = arith.constant 0 : i32
    return %c0_i32, %c0_i32_0 : i32, i32
  }
  func.func @transform_4(%arg0: i32, %arg1: i32, %arg2: memref<2xi32, #tpu.memory_space<smem>>) -> (i32, i32) {
    %c0_i32 = arith.constant 0 : i32
    %c0_i32_0 = arith.constant 0 : i32
    return %c0_i32, %arg0 : i32, i32
  }
}

</mosaic_0001>

<llo_original>
// kernel: tpu_custom_call.1
$region0: #{tpu_custom_call.1}
  #allocation0 [shape = 'u32[]', space=smem, size = 0x4, offset = 0x4, fixed_abs, tag = 'smem constant byte address 0x4 - core index']
  #allocation1 [shape = 'u32[144,128]{1,0:T(1,128)}', space=vmem, size = 0x12000, scoped, tag = 'internal scratch']
  #allocation2 [shape = 's32[1]{0}', space=sflag, size = 0x4, scoped, tag = 'scoped memory for tpu_custom_call.1']
  #allocation3 [shape = 'u8[512]{0}', space=smem, size = 0x200, scoped, tag = 'prefetched SMEM operand 0']
  %s0 = inlined_call_operand.vmem [shape: s32[2], index: 0, kind: input, shape index: {}]
  %s1 = inlined_call_operand.vmem [shape: s32[1,512], index: 1, kind: input, shape index: {}]
  %s2 = inlined_call_operand.vmem [shape: f32[8,256], index: 2, kind: input, shape index: {}]
  %s3 = inlined_call_operand.vmem [shape: f32[8,1], index: 3, kind: input, shape index: {}]
  %s4 = inlined_call_operand.vmem [shape: f32[8,1], index: 4, kind: input, shape index: {}]
  %s5 = inlined_call_operand.hbm [shape: f32[8,512], index: 5, kind: output, shape index: {}]
  %s6 = sld [smem:[#allocation0]]
  $region57: #{tpu_custom_call.1} parent=0
    _
  %s8 = ssub.s32 1, %s6
  %s9 = scalar_select 0, %s8, %s6
  %s10 = sshll.u32 %s0, 4
  %s11 = int_to_ptr.vmem [resolvable:$true] %s10
  %13 = dma.vmem_to_smem %s11, 16, [#allocation3], [#allocation2]
  %14 = dma.done [#allocation2], 16
  %15 = sfence
  $region1: #{tpu_custom_call.1} parent=0
    #allocation4 [shape = 'u8[16384]{0}', space=vmem, size = 0x4000, scoped, tag = 'output window, operand 0']
    #allocation5 [shape = 's32[2]{0}', space=sflag, size = 0x8, scoped, tag = 'scoped memory for tpu_custom_call.1']
    %16 = vsyncpa [#allocation5], 0
    %s17 = scalar_lea.sflag [#allocation5], 1
    %18 = vsyncpa %s17, 0
    loop: start=0, step=1, limit=6
    $region2: #{tpu_custom_call.1} parent=1 // loop_pre_header
      _
    $region3: #{tpu_custom_call.1} parent=1 // loop_header
      %s20 = sphi 0, %s24
      %p21 = scmp.ge.s32.totalorder %s20, 6
      %s27 = sphi 0, %s39
      %s28 = sphi 0, %s35
      %s29 = sphi 0, %s27
      %s30 = sphi 0, %s28
      %s31 = sphi 0, %s29
      %s32 = sphi 0, %s30
      %s42 = sphi 0, %s44
      %s45 = sphi 0, %s42
      %s46 = sphi 0, %s45
      %s62 = sphi 0, %s46
      %s72 = sphi 0, %s74
      %s75 = sphi 0, %s72
      %s76 = sphi 0, %s75
      %s92 = sphi 0, %s76
      %s96 = sphi 0, %s96
      %s98 = sphi 0, %s96
      %s99 = sphi 0, %s98
      %s113 = sphi 0, %s99
      %s117 = sphi 0, %s117
      %s119 = sphi 0, %s117
      %s120 = sphi 0, %s119
      %s134 = sphi 0, %s120
      %s140 = sphi 0, %s142
      %s143 = sphi 0, %s140
      %s144 = sphi 0, %s143
      %s160 = sphi 0, %s144
    $region4: #{tpu_custom_call.1} parent=1 // loop_header_branch
      %23 = sbr.rel (%p21) target = $region8
    $region5: #{tpu_custom_call.1} parent=1 // loop_body
      %s25 = ssub.s32 %s20, 1
      %s26 = ssub.s32 %s20, 2
      %s33 = sadd.s32 1, %s28
      %p34 = scmp.ge.s32.totalorder %s33, 2
      %s35 = scalar_select %p34, 0, %s33
      %s36 = sadd.s32 1, %s27
      %s37 = scalar_select %p34, %s36, %s27
      %p38 = scmp.ge.s32.totalorder %s37, 2
      %s39 = scalar_select %p38, 0, %s37
      %s40 = ssub.s32 %s27, %s39
      %p41 = scmp.eq.s32.totalorder %s40, 0
      %s43 = sadd.s32 %s42, 1
      %s44 = scalar_select %p41, %s42, %s43
      %p47 = pneg %p41
      %p48 = scmp.eq.s32.totalorder %s20, 3
      %p49 = por %p47, %p48
      %p50 = scmp.ne.s32.totalorder %s42, %s45
      %p51 = scmp.eq.s32.totalorder %s20, 0
      %p52 = por %p50, %p51
      %p53 = scmp.ne.s32.totalorder %s42, %s45
      %p54 = scmp.eq.s32.totalorder %s25, 3
      %p55 = por %p53, %p54
      %p56 = scmp.ne.s32.totalorder %s45, %s46
      %p57 = scmp.eq.s32.totalorder %s25, 0
      %p58 = por %p56, %p57
      %p59 = scmp.ne.s32.totalorder %s45, %s46
      %p60 = scmp.eq.s32.totalorder %s26, 3
      %p61 = por %p59, %p60
      %p63 = scmp.ne.s32.totalorder %s46, %s62
      %p64 = scmp.eq.s32.totalorder %s26, 0
      %p65 = por %p63, %p64
      %s66 = sld [smem:[#allocation3 + %s27]]
      %s67 = sadd.s32 %s66, %s28
      %s68 = sld [smem:[#allocation3 + %s39]]
      %s69 = sadd.s32 %s68, %s35
      %s70 = ssub.s32 %s67, %s69
      %p71 = scmp.eq.s32.totalorder %s70, 0
      %s73 = sadd.s32 %s72, 1
      %s74 = scalar_select %p71, %s72, %s73
      %p77 = pneg %p71
      %p78 = scmp.eq.s32.totalorder %s20, 3
      %p79 = por %p77, %p78
      %p80 = scmp.ne.s32.totalorder %s72, %s75
      %p81 = scmp.eq.s32.totalorder %s20, 0
      %p82 = por %p80, %p81
      %p83 = scmp.ne.s32.totalorder %s72, %s75
      %p84 = scmp.eq.s32.totalorder %s25, 3
      %p85 = por %p83, %p84
      %p86 = scmp.ne.s32.totalorder %s75, %s76
      %p87 = scmp.eq.s32.totalorder %s25, 0
      %p88 = por %p86, %p87
      %p89 = scmp.ne.s32.totalorder %s75, %s76
      %p90 = scmp.eq.s32.totalorder %s26, 3
      %p91 = por %p89, %p90
      %p93 = scmp.ne.s32.totalorder %s76, %s92
      %p94 = scmp.eq.s32.totalorder %s26, 0
      %p95 = por %p93, %p94
      %s97 = sadd.s32 %s96, 1
      %p100 = scmp.eq.s32.totalorder %s20, 3
      %p101 = scmp.ne.s32.totalorder %s96, %s98
      %p102 = scmp.eq.s32.totalorder %s20, 0
      %p103 = por %p101, %p102
      %p104 = scmp.ne.s32.totalorder %s96, %s98
      %p105 = scmp.eq.s32.totalorder %s25, 3
      %p106 = por %p104, %p105
      %p107 = scmp.ne.s32.totalorder %s98, %s99
      %p108 = scmp.eq.s32.totalorder %s25, 0
      %p109 = por %p107, %p108
      %p110 = scmp.ne.s32.totalorder %s98, %s99
      %p111 = scmp.eq.s32.totalorder %s26, 3
      %p112 = por %p110, %p111
      %p114 = scmp.ne.s32.totalorder %s99, %s113
      %p115 = scmp.eq.s32.totalorder %s26, 0
      %p116 = por %p114, %p115
      %s118 = sadd.s32 %s117, 1
      %p121 = scmp.eq.s32.totalorder %s20, 3
      %p122 = scmp.ne.s32.totalorder %s117, %s119
      %p123 = scmp.eq.s32.totalorder %s20, 0
      %p124 = por %p122, %p123
      %p125 = scmp.ne.s32.totalorder %s117, %s119
      %p126 = scmp.eq.s32.totalorder %s25, 3
      %p127 = por %p125, %p126
      %p128 = scmp.ne.s32.totalorder %s119, %s120
      %p129 = scmp.eq.s32.totalorder %s25, 0
      %p130 = por %p128, %p129
      %p131 = scmp.ne.s32.totalorder %s119, %s120
      %p132 = scmp.eq.s32.totalorder %s26, 3
      %p133 = por %p131, %p132
      %p135 = scmp.ne.s32.totalorder %s120, %s134
      %p136 = scmp.eq.s32.totalorder %s26, 0
      %p137 = por %p135, %p136
      %s138 = ssub.s32 %s27, %s39
      %p139 = scmp.eq.s32.totalorder %s138, 0
      %s141 = sadd.s32 %s140, 1
      %s142 = scalar_select %p139, %s140, %s141
      %p145 = pneg %p139
      %p146 = scmp.eq.s32.totalorder %s20, 3
      %p147 = por %p145, %p146
      %p148 = scmp.ne.s32.totalorder %s140, %s143
      %p149 = scmp.eq.s32.totalorder %s20, 0
      %p150 = por %p148, %p149
      %p151 = scmp.ne.s32.totalorder %s140, %s143
      %p152 = scmp.eq.s32.totalorder %s25, 3
      %p153 = por %p151, %p152
      %p154 = scmp.ne.s32.totalorder %s143, %s144
      %p155 = scmp.eq.s32.totalorder %s25, 0
      %p156 = por %p154, %p155
      %p157 = scmp.ne.s32.totalorder %s143, %s144
      %p158 = scmp.eq.s32.totalorder %s26, 3
      %p159 = por %p157, %p158
      %p161 = scmp.ne.s32.totalorder %s144, %s160
      %p162 = scmp.eq.s32.totalorder %s26, 0
      %p163 = por %p161, %p162
      %p164 = scmp.le.s32.totalorder 1, %s20
      %p165 = scmp.lt.s32.totalorder %s20, 5
      %p166 = pnand %p164, %p165
      %p167 = pneg %p166
      // Predicated region
      $region9: #{tpu_custom_call.1} parent=5 // pred_check
        _
      $region10: #{tpu_custom_call.1} parent=5 // pred_check_branch
        %169 = sbr.rel (%p166) target = $region12
      $region11: #{tpu_custom_call.1} parent=5 // pred_region
        %s170 = ssub.s32 %s20, 1
        // Predicated region
        $region13: #{tpu_custom_call.1} parent=11 // pred_check
          %p171 = pneg %p109
        $region14: #{tpu_custom_call.1} parent=11 // pred_check_branch
          %173 = sbr.rel (%p171) target = $region16
        $region15: #{tpu_custom_call.1} parent=11 // pred_region
          _
        $region16: #{tpu_custom_call.1} parent=11 // pred_fallthru
          _
        // Predicated region
        $region17: #{tpu_custom_call.1} parent=11 // pred_check
          %p174 = pneg %p130
        $region18: #{tpu_custom_call.1} parent=11 // pred_check_branch
          %176 = sbr.rel (%p174) target = $region20
        $region19: #{tpu_custom_call.1} parent=11 // pred_region
          _
        $region20: #{tpu_custom_call.1} parent=11 // pred_fallthru
          _
      $region12: #{tpu_custom_call.1} parent=5 // pred_fallthru
        _
      %p177 = scmp.lt.s32.totalorder %s20, 4
      // Predicated region
      $region21: #{tpu_custom_call.1} parent=5 // pred_check
        %p178 = pneg %p177
      $region22: #{tpu_custom_call.1} parent=5 // pred_check_branch
        %180 = sbr.rel (%p178) target = $region24
      $region23: #{tpu_custom_call.1} parent=5 // pred_region
        // Predicated region
        $region25: #{tpu_custom_call.1} parent=23 // pred_check
          %p181 = pneg %p52
        $region26: #{tpu_custom_call.1} parent=23 // pred_check_branch
          %183 = sbr.rel (%p181) target = $region28
        $region27: #{tpu_custom_call.1} parent=23 // pred_region
          %s184 = smul.u32 2, %s27
          %p185 = scmp.lt.s32.totalorder %s184, 3
          %s186 = scalar_select %p185, %s184, 3
          %s187 = scalar_lea.vmem %s1, %s186
          %s188 = smul.u32 2, %s27
        $region28: #{tpu_custom_call.1} parent=23 // pred_fallthru
          _
        // Predicated region
        $region29: #{tpu_custom_call.1} parent=23 // pred_check
          %p189 = pneg %p82
        $region30: #{tpu_custom_call.1} parent=23 // pred_check_branch
          %191 = sbr.rel (%p189) target = $region32
        $region31: #{tpu_custom_call.1} parent=23 // pred_region
          %s192 = sld [smem:[#allocation3 + %s27]]
          %s193 = sadd.s32 %s192, %s28
          %p194 = scmp.lt.s32.totalorder %s193, 1
          %s195 = scalar_select %p194, %s193, 1
          %s196 = smul.addr %s195, 8
          %s197 = scalar_lea.vmem %s2, %s196
          %s198 = sld [smem:[#allocation3 + %s27]]
          %s199 = sadd.s32 %s198, %s28
        $region32: #{tpu_custom_call.1} parent=23 // pred_fallthru
          _
      $region24: #{tpu_custom_call.1} parent=5 // pred_fallthru
        _
      %p200 = scmp.le.s32.totalorder 1, %s20
      %p201 = scmp.lt.s32.totalorder %s20, 5
      %p202 = pnand %p200, %p201
      %p203 = pneg %p202
      // Predicated region
      $region33: #{tpu_custom_call.1} parent=5 // pred_check
        _
      $region34: #{tpu_custom_call.1} parent=5 // pred_check_branch
        %205 = sbr.rel (%p202) target = $region36
      $region35: #{tpu_custom_call.1} parent=5 // pred_region
        %s206 = ssub.s32 %s20, 1
        %s207 = smul.u32 2, %s29
        %p208 = scmp.lt.s32.totalorder %s207, 3
        %s209 = scalar_select %p208, %s207, 3
        %s210 = scalar_lea.vmem %s1, %s209
        %p211 = pneg %p58
        %p212 = pneg %p55
        %s213 = sld [smem:[#allocation3 + %s29]]
        %s214 = sadd.s32 %s213, %s30
        %p215 = scmp.lt.s32.totalorder %s214, 1
        %s216 = scalar_select %p215, %s214, 1
        %s217 = smul.addr %s216, 8
        %s218 = scalar_lea.vmem %s2, %s217
        %p219 = pneg %p88
        %p220 = pneg %p85
        %p221 = pneg %p109
        %p222 = pneg %p106
        %p223 = pneg %p130
        %p224 = pneg %p127
        %p225 = pneg %p156
        %p226 = pneg %p153
        %s227 = sand.u32 %s143, 1
        %s228 = scalar_lea.sflag [#allocation5], %s227
        %s229 = sand.u32 %s143, 1
        %s230 = smul.addr %s229, 16
        %s231 = scalar_lea.vmem [#allocation4], %s230
        %s232 = smul.u32 2, %s29
        %p233 = scmp.lt.s32.totalorder %s232, 3
        %s234 = scalar_select %p233, %s232, 3
        %s235 = scalar_lea.vmem %s1, %s234
        %s236 = smul.u32 2, %s29
        %s237 = sld [smem:[#allocation3 + %s29]]
        %s238 = sadd.s32 %s237, %s30
        %p239 = scmp.lt.s32.totalorder %s238, 1
        %s240 = scalar_select %p239, %s238, 1
        %s241 = smul.addr %s240, 8
        %s242 = scalar_lea.vmem %s2, %s241
        %s243 = sld [smem:[#allocation3 + %s29]]
        %s244 = sadd.s32 %s243, %s30
        %s245 = smul.u32 2, %s29
        %p246 = scmp.eq.s32.totalorder %s30, 0
        // Predicated region
        $region37: #{tpu_custom_call.1} parent=35 // pred_check
          %p247 = pneg %p246
        $region38: #{tpu_custom_call.1} parent=35 // pred_check_branch
          %249 = sbr.rel (%p247) target = $region40
        $region39: #{tpu_custom_call.1} parent=35 // pred_region
          %250 = vst [vmem:[%s231] sm:$0xff] 0.0
          %251 = vst [vmem:[%s231 + $0x8] sm:$0xff] 0.0
        $region40: #{tpu_custom_call.1} parent=35 // pred_fallthru
          _
        %s252 = sld [smem:[#allocation3 + %s29]]
        %s253 = sadd.s32 %s252, %s30
        %s254 = smul.u32 %s253, 128
        %v255 = vlaneseq
        %v256 = vshrl.u32 %v255, 7
        %v257 = vadd.s32 %v256, 8
        %v258 = vadd.s32 %v256, 16
        %v259 = vadd.s32 %v256, 24
        %v260 = vadd.s32 %v256, 32
        %v261 = vadd.s32 %v256, 40
        %v262 = vadd.s32 %v256, 48
        %v263 = vadd.s32 %v256, 56
        %v264 = vadd.s32 %v256, 64
        %v265 = vadd.s32 %v256, 72
        %v266 = vadd.s32 %v256, 80
        %v267 = vadd.s32 %v256, 88
        %v268 = vadd.s32 %v256, 96
        %v269 = vadd.s32 %v256, 104
        %v270 = vadd.s32 %v256, 112
        %v271 = vadd.s32 %v256, 120
        %v272 = vld [vmem:[%s235] sm:$0x3]
        %v273 = vstv %s254
        %v274 = vsub.s32 %v272, %v273
        %v275 = vlaneseq
        %v276 = vshrl.u32 %v275, 7
        %v277 = vsub.s32 0, %v276
        %v278 = vrot.slane %v274, %v277
        %v279 = vlaneseq
        %v280 = vshrl.u32 %v279, 7
        %v281 = vsub.s32 1, %v280
        %v282 = vrot.slane %v274, %v281
        %vm283 = vcmp.eq.s32.totalorder %v256, %v278
        %vm284 = vcmp.eq.s32.totalorder %v256, %v282
        %vm285 = vcmp.eq.s32.totalorder %v257, %v278
        %vm286 = vcmp.eq.s32.totalorder %v257, %v282
        %vm287 = vcmp.eq.s32.totalorder %v258, %v278
        %vm288 = vcmp.eq.s32.totalorder %v258, %v282
        %vm289 = vcmp.eq.s32.totalorder %v259, %v278
        %vm290 = vcmp.eq.s32.totalorder %v259, %v282
        %vm291 = vcmp.eq.s32.totalorder %v260, %v278
        %vm292 = vcmp.eq.s32.totalorder %v260, %v282
        %vm293 = vcmp.eq.s32.totalorder %v261, %v278
        %vm294 = vcmp.eq.s32.totalorder %v261, %v282
        %vm295 = vcmp.eq.s32.totalorder %v262, %v278
        %vm296 = vcmp.eq.s32.totalorder %v262, %v282
        %vm297 = vcmp.eq.s32.totalorder %v263, %v278
        %vm298 = vcmp.eq.s32.totalorder %v263, %v282
        %vm299 = vcmp.eq.s32.totalorder %v264, %v278
        %vm300 = vcmp.eq.s32.totalorder %v264, %v282
        %vm301 = vcmp.eq.s32.totalorder %v265, %v278
        %vm302 = vcmp.eq.s32.totalorder %v265, %v282
        %vm303 = vcmp.eq.s32.totalorder %v266, %v278
        %vm304 = vcmp.eq.s32.totalorder %v266, %v282
        %vm305 = vcmp.eq.s32.totalorder %v267, %v278
        %vm306 = vcmp.eq.s32.totalorder %v267, %v282
        %vm307 = vcmp.eq.s32.totalorder %v268, %v278
        %vm308 = vcmp.eq.s32.totalorder %v268, %v282
        %vm309 = vcmp.eq.s32.totalorder %v269, %v278
        %vm310 = vcmp.eq.s32.totalorder %v269, %v282
        %vm311 = vcmp.eq.s32.totalorder %v270, %v278
        %vm312 = vcmp.eq.s32.totalorder %v270, %v282
        %vm313 = vcmp.eq.s32.totalorder %v271, %v278
        %vm314 = vcmp.eq.s32.totalorder %v271, %v282
        %v315 = vsel %vm283, 1, 0
        %v316 = vsel %vm284, 1, 0
        %v317 = vsel %vm285, 1, 0
        %v318 = vsel %vm286, 1, 0
        %v319 = vsel %vm287, 1, 0
        %v320 = vsel %vm288, 1, 0
        %v321 = vsel %vm289, 1, 0
        %v322 = vsel %vm290, 1, 0
        %v323 = vsel %vm291, 1, 0
        %v324 = vsel %vm292, 1, 0
        %v325 = vsel %vm293, 1, 0
        %v326 = vsel %vm294, 1, 0
        %v327 = vsel %vm295, 1, 0
        %v328 = vsel %vm296, 1, 0
        %v329 = vsel %vm297, 1, 0
        %v330 = vsel %vm298, 1, 0
        %v331 = vsel %vm299, 1, 0
        %v332 = vsel %vm300, 1, 0
        %v333 = vsel %vm301, 1, 0
        %v334 = vsel %vm302, 1, 0
        %v335 = vsel %vm303, 1, 0
        %v336 = vsel %vm304, 1, 0
        %v337 = vsel %vm305, 1, 0
        %v338 = vsel %vm306, 1, 0
        %v339 = vsel %vm307, 1, 0
        %v340 = vsel %vm308, 1, 0
        %v341 = vsel %vm309, 1, 0
        %v342 = vsel %vm310, 1, 0
        %v343 = vsel %vm311, 1, 0
        %v344 = vsel %vm312, 1, 0
        %v345 = vsel %vm313, 1, 0
        %v346 = vsel %vm314, 1, 0
        %v347 = vcvt.s32.f32 %v315
        %v348 = vcvt.s32.f32 %v316
        %v349 = vcvt.s32.f32 %v317
        %v350 = vcvt.s32.f32 %v318
        %v351 = vcvt.s32.f32 %v319
        %v352 = vcvt.s32.f32 %v320
        %v353 = vcvt.s32.f32 %v321
        %v354 = vcvt.s32.f32 %v322
        %v355 = vcvt.s32.f32 %v323
        %v356 = vcvt.s32.f32 %v324
        %v357 = vcvt.s32.f32 %v325
        %v358 = vcvt.s32.f32 %v326
        %v359 = vcvt.s32.f32 %v327
        %v360 = vcvt.s32.f32 %v328
        %v361 = vcvt.s32.f32 %v329
        %v362 = vcvt.s32.f32 %v330
        %v363 = vcvt.s32.f32 %v331
        %v364 = vcvt.s32.f32 %v332
        %v365 = vcvt.s32.f32 %v333
        %v366 = vcvt.s32.f32 %v334
        %v367 = vcvt.s32.f32 %v335
        %v368 = vcvt.s32.f32 %v336
        %v369 = vcvt.s32.f32 %v337
        %v370 = vcvt.s32.f32 %v338
        %v371 = vcvt.s32.f32 %v339
        %v372 = vcvt.s32.f32 %v340
        %v373 = vcvt.s32.f32 %v341
        %v374 = vcvt.s32.f32 %v342
        %v375 = vcvt.s32.f32 %v343
        %v376 = vcvt.s32.f32 %v344
        %v377 = vcvt.s32.f32 %v345
        %v378 = vcvt.s32.f32 %v346
        %v379 = vld [vmem:[%s231] sm:$0xff]
        %v380 = vld [vmem:[%s231 + $0x8] sm:$0xff]
        %v381 = vld [vmem:[%s242] sm:$0xff]
        %382 = vmatprep.subr.mxu0 %v348
        %383 = vmatpush1.msra.mxu0 %v347
        %384 = vmatprep.subr.mxu0 %v350
        %385 = vmatpush1.msra.mxu0 %v349
        %386 = vmatprep.subr.mxu0 %v352
        %387 = vmatpush1.msra.mxu0 %v351
        %388 = vmatprep.subr.mxu0 %v354
        %389 = vmatpush1.msra.mxu0 %v353
        %390 = vmatprep.subr.mxu0 %v356
        %391 = vmatpush1.msra.mxu0 %v355
        %392 = vmatprep.subr.mxu0 %v358
        %393 = vmatpush1.msra.mxu0 %v357
        %394 = vmatprep.subr.mxu0 %v360
        %395 = vmatpush1.msra.mxu0 %v359
        %396 = vmatprep.subr.mxu0 %v362
        %397 = vmatpush1.msra.mxu0 %v361
        %398 = vmatprep.subr.mxu0 %v364
        %399 = vmatpush1.msra.mxu0 %v363
        %400 = vmatprep.subr.mxu0 %v366
        %401 = vmatpush1.msra.mxu0 %v365
        %402 = vmatprep.subr.mxu0 %v368
        %403 = vmatpush1.msra.mxu0 %v367
        %404 = vmatprep.subr.mxu0 %v370
        %405 = vmatpush1.msra.mxu0 %v369
        %406 = vmatprep.subr.mxu0 %v372
        %407 = vmatpush1.msra.mxu0 %v371
        %408 = vmatprep.subr.mxu0 %v374
        %409 = vmatpush1.msra.mxu0 %v373
        %410 = vmatprep.subr.mxu0 %v376
        %411 = vmatpush1.msra.mxu0 %v375
        %412 = vmatprep.subr.mxu0 %v378
        %413 = vmatpush1.msra.mxu0 %v377
        %414 = vmatprep.subr.mxu0 0.0
        %415 = vmatpush1.msra.mxu0 0.0
        %416 = vmatprep.subr.mxu0 0.0
        %417 = vmatpush1.msra.mxu0 0.0
        %418 = vmatprep.subr.mxu0 0.0
        %419 = vmatpush1.msra.mxu0 0.0
        %420 = vmatprep.subr.mxu0 0.0
        %421 = vmatpush1.msra.mxu0 0.0
        %422 = vmatprep.subr.mxu0 0.0
        %423 = vmatpush1.msra.mxu0 0.0
        %424 = vmatprep.subr.mxu0 0.0
        %425 = vmatpush1.msra.mxu0 0.0
        %426 = vmatprep.subr.mxu0 0.0
        %427 = vmatpush1.msra.mxu0 0.0
        %428 = vmatprep.subr.mxu0 0.0
        %429 = vmatpush1.msra.mxu0 0.0
        %430 = vmatprep.subr.mxu0 0.0
        %431 = vmatpush1.msra.mxu0 0.0
        %432 = vmatprep.subr.mxu0 0.0
        %433 = vmatpush1.msra.mxu0 0.0
        %434 = vmatprep.subr.mxu0 0.0
        %435 = vmatpush1.msra.mxu0 0.0
        %436 = vmatprep.subr.mxu0 0.0
        %437 = vmatpush1.msra.mxu0 0.0
        %438 = vmatprep.subr.mxu0 0.0
        %439 = vmatpush1.msra.mxu0 0.0
        %440 = vmatprep.subr.mxu0 0.0
        %441 = vmatpush1.msra.mxu0 0.0
        %442 = vmatprep.subr.mxu0 0.0
        %443 = vmatpush1.msra.mxu0 0.0
        %444 = vmatprep.subr.mxu0 0.0
        %445 = vmatpush1.msra.mxu0 0.0
        %446 = vmatprep.mubr.f32.mxu0 0.0
        %447 = vmatmul.mubr.f32.gmra.mrb[0].mxu0 %v381
        %v448 = vpop.f32.mrb[0].mxu0
        %v449 = vadd.f32 0.0, %v448
        %v450 = vpop.f32.mrb[0].mxu0
        %v451 = vadd.f32 0.0, %v450
        %452 = vdwg.mxu0
        %v453 = vadd.f32 %v379, %v449
        %v454 = vadd.f32 %v380, %v451
        %455 = vst [vmem:[%s231] sm:$0xff] %v453
        %456 = vst [vmem:[%s231 + $0x8] sm:$0xff] %v454
        %p457 = scmp.eq.s32.totalorder %s30, 1
        // Predicated region
        $region41: #{tpu_custom_call.1} parent=35 // pred_check
          %p458 = pneg %p457
        $region42: #{tpu_custom_call.1} parent=35 // pred_check_branch
          %460 = sbr.rel (%p458) target = $region44
        $region43: #{tpu_custom_call.1} parent=35 // pred_region
          %v461 = vld [vmem:[%s231] sm:$0xff]
          %v462 = vld [vmem:[%s231 + $0x8] sm:$0xff]
          %v463 = vld [vmem:[%s3] sm:$0xff]
          %465 = vset.pattern.permute.xlu0 0
          %466 = vperm.xlu0 %465, %v463
          %v467 = vpop.permute.xlu0 %466
          %v469 = vsub.f32 %v461, %v467
          %v470 = vsub.f32 %v462, %v467
          %v471 = vld [vmem:[%s4] sm:$0xff]
          %473 = vset.pattern.permute.xlu0 0
          %474 = vperm.xlu0 %473, %v471
          %v475 = vpop.permute.xlu0 %474
          %v477 = vmul.f32 %v469, %v475
          %v478 = vmul.f32 %v470, %v475
          %479 = vst [vmem:[%s231] sm:$0xff] %v477
          %480 = vst [vmem:[%s231 + $0x8] sm:$0xff] %v478
        $region44: #{tpu_custom_call.1} parent=35 // pred_fallthru
          _
        %s481 = sand.u32 %s143, 1
        %s482 = scalar_lea.sflag [#allocation5], %s481
        %s483 = sand.u32 %s143, 1
        %s484 = smul.addr %s483, 16
        %s485 = scalar_lea.vmem [#allocation4], %s484
        // Predicated region
        $region45: #{tpu_custom_call.1} parent=35 // pred_check
          %p486 = pneg %p153
        $region46: #{tpu_custom_call.1} parent=35 // pred_check_branch
          %488 = sbr.rel (%p486) target = $region48
        $region47: #{tpu_custom_call.1} parent=35 // pred_region
          %s489 = smul.u32 2, %s29
          %s491 = ssub.s32 256, 256
          %492 = vsyncadd %s482, %s491
          %s493 = smul.addr %s489, 128
          %s494 = scalar_lea.hbm %s5, %s493
          %s496 = sshll.u32 %s485, 4
          %s497 = int_to_ptr.vmem [resolvable:$true] %s496
          %499 = dma.vmem_to_hbm [thread:$0]  %s497, 256, %s494, %s482
        $region48: #{tpu_custom_call.1} parent=35 // pred_fallthru
          _
      $region36: #{tpu_custom_call.1} parent=5 // pred_fallthru
        _
      %p500 = scmp.le.s32.totalorder 2, %s20
      // Predicated region
      $region49: #{tpu_custom_call.1} parent=5 // pred_check
        %p501 = pneg %p500
      $region50: #{tpu_custom_call.1} parent=5 // pred_check_branch
        %503 = sbr.rel (%p501) target = $region52
      $region51: #{tpu_custom_call.1} parent=5 // pred_region
        %s504 = ssub.s32 %s20, 2
        // Predicated region
        $region53: #{tpu_custom_call.1} parent=51 // pred_check
          %p505 = pneg %p159
        $region54: #{tpu_custom_call.1} parent=51 // pred_check_branch
          %507 = sbr.rel (%p505) target = $region56
        $region55: #{tpu_custom_call.1} parent=51 // pred_region
          %s508 = sand.u32 %s144, 1
          %s509 = scalar_lea.sflag [#allocation5], %s508
          %s510 = sand.u32 %s144, 1
          %s511 = smul.addr %s510, 16
          %s512 = scalar_lea.vmem [#allocation4], %s511
          %513 = dma.done %s509, 256
        $region56: #{tpu_custom_call.1} parent=51 // pred_fallthru
          _
      $region52: #{tpu_custom_call.1} parent=5 // pred_fallthru
        _
    $region6: #{tpu_custom_call.1} parent=1 // loop_footer
      %s24 = sadd.s32 1, %s20
    $region7: #{tpu_custom_call.1} parent=1 // loop_footer_branch
      %19 = sbr.rel target = $region3
    $region8: #{tpu_custom_call.1} parent=1 // loop_exit
      _
    %514 = vsyncpa [#allocation5], 1
    %s515 = scalar_lea.sflag [#allocation5], 1
    %516 = vsyncpa %s515, 1

</llo_original>
